<compile_context>
chip_gen: v7x
topology: tpu7x:2x2x1
jax: 0.10.0
libtpu: 0.0.40
codegen_flags: <defaults>
</compile_context>

<pallas_src>
import jax
import jax.numpy as jnp
from jax.experimental import pallas as pl
from jax.experimental.pallas import tpu as pltpu


def _dyt_kernel(x_ref, p_ref, o_ref):
    # x_ref: (row_tile, W)    p_ref: (3, W) holding [a; w; b]    o_ref: (row_tile, W)
    x = x_ref[...].astype(jnp.float32)
    p = p_ref[...]                     # already float32
    a = p[0:1, :]
    w = p[1:2, :]
    b = p[2:3, :]
    o_ref[...] = (w * jnp.tanh(a * x) + b).astype(o_ref.dtype)


def dyt_norm(x, a, w, b, *, row_tile=None, target_block_bytes=2 * 1024 * 1024):
    """Apply DyTNorm: w * tanh(a * x) + b, broadcasting params over the last dim."""
    orig_shape = x.shape
    H = orig_shape[-1]
    assert a.shape == (H,) and w.shape == (H,) and b.shape == (H,)

    itemsize = jnp.dtype(x.dtype).itemsize
    # Minimum sublane granularity for the second-to-last block dim (dtype packing).
    sublane = {4: 8, 2: 16, 1: 32}.get(itemsize, 8)

    x2 = x.reshape(-1, H)
    R = x2.shape[0]

    # Lane-dense repacking: fold k rows into the lane axis when H < 128.
    k = max(1, -(-128 // H)) if H < 128 else 1
    W = k * H
    total_packed = pl.cdiv(R, k)               # packed rows before tile padding

    # VMEM-budget-driven row tile (~target_block_bytes per x block).
    if row_tile is None:
        rt = max(sublane, (target_block_bytes // (W * itemsize)) // sublane * sublane)
        # Never bigger than the (sublane-padded) data itself.
        rt = min(rt, max(sublane, pl.cdiv(total_packed, sublane) * sublane))
        # Prefer >= 8 grid steps when there is enough data (v7x has 2 TCs).
        if total_packed >= 8 * sublane:
            rt = min(rt, max(sublane, (pl.cdiv(total_packed, 8) // sublane) * sublane))
        row_tile = rt
    else:
        row_tile = max(sublane, (int(row_tile) // sublane) * sublane)

    # Pad rows so the packed slab divides exactly into tiles, then pack.
    chunk = k * row_tile
    Rp = pl.cdiv(R, chunk) * chunk
    if Rp != R:
        x2 = jnp.pad(x2, ((0, Rp - R), (0, 0)))
    xp = x2.reshape(Rp // k, W)

    # Pack a, w, b into a single lane-dense (3, W) float32 block.
    params = jnp.stack(
        [jnp.tile(a.astype(jnp.float32), k),
         jnp.tile(w.astype(jnp.float32), k),
         jnp.tile(b.astype(jnp.float32), k)],
        axis=0,
    )

    grid = (Rp // chunk,)

    # Scoped-VMEM budget: double-buffered input + double-buffered output +
    # param block, with headroom.  Floor at the v5e default (16 MiB), cap well
    # under v7x's 64 MiB physical VMEM.
    block_bytes = row_tile * W * itemsize
    vmem_limit = int(4 * block_bytes * 1.3 + 8 * 3 * W * 4 + (1 << 20))
    vmem_limit = max(16 * 1024 * 1024, min(vmem_limit, 48 * 1024 * 1024))

    cost = pl.CostEstimate(
        flops=3 * R * H,
        transcendentals=R * H,
        bytes_accessed=2 * R * H * itemsize + 3 * H * 4,
    )

    out = pl.pallas_call(
        _dyt_kernel,
        out_shape=jax.ShapeDtypeStruct((Rp // k, W), x.dtype),
        grid_spec=pltpu.PrefetchScalarGridSpec(
            num_scalar_prefetch=0,
            grid=grid,
            in_specs=[
                pl.BlockSpec((row_tile, W), lambda i: (i, 0)),
                pl.BlockSpec((3, W), lambda i: (0, 0)),
            ],
            out_specs=pl.BlockSpec((row_tile, W), lambda i: (i, 0)),
        ),
        compiler_params=pltpu.CompilerParams(
            dimension_semantics=("parallel",),
            vmem_limit_bytes=vmem_limit,
        ),
        cost_estimate=cost,
    )(xp, params)

    out = out.reshape(Rp, H)
    if Rp != R:
        out = out[:R]
    return out.reshape(orig_shape)


if __name__ == "__main__":
    key = jax.random.PRNGKey(0)

    # --- Primary check: small shape matching the module (hidden = size). ---
    batch, seq, hidden = 2, 8, 32
    x = jax.random.normal(key, (batch, seq, hidden), dtype=jnp.float32)

    # Deterministic parameter init matching nn.Parameter(torch.ones/zeros(size)).
    a = jnp.ones((hidden,), dtype=jnp.float32)
    w = jnp.ones((hidden,), dtype=jnp.float32)
    b = jnp.zeros((hidden,), dtype=jnp.float32)

    y = dyt_norm(x, a, w, b)
    y = jax.block_until_ready(y)
    y_ref = w * jnp.tanh(a * x) + b
    assert jnp.allclose(y, y_ref, atol=1e-6, rtol=1e-6), "mismatch vs reference (H<128 path)"

    # --- Secondary check: H >= 128, row count not a multiple of 8 (tail path). ---
    k1, k2, k3, k4 = jax.random.split(jax.random.PRNGKey(0), 4)
    H2 = 160
    x2 = jax.random.normal(k1, (3, 5, H2), dtype=jnp.float32)
    a2 = jax.random.normal(k2, (H2,), dtype=jnp.float32)
    w2 = jax.random.normal(k3, (H2,), dtype=jnp.float32)
    b2 = jax.random.normal(k4, (H2,), dtype=jnp.float32)
    y2 = jax.block_until_ready(dyt_norm(x2, a2, w2, b2))
    y2_ref = w2 * jnp.tanh(a2 * x2) + b2
    assert jnp.allclose(y2, y2_ref, atol=1e-5, rtol=1e-5), "mismatch vs reference (tail path)"

    print("KERNEL_OK")
</pallas_src>

<mosaic_0001>
module attributes {stable_mosaic.version = 11 : i64} {
  func.func @_dyt_kernel(%arg0: i32, %arg1: memref<8x128xf32, #tpu.memory_space<vmem>>, %arg2: memref<3x128xf32, #tpu.memory_space<vmem>>, %arg3: memref<8x128xf32, #tpu.memory_space<vmem>>) attributes {dimension_semantics = [#tpu.dimension_semantics<parallel>], iteration_bounds = array<i64: 1>, scalar_prefetch = 0 : i64, scratch_operands = 0 : i64, tpu.core_type = #tpu.core_type<tc>, window_params = [{transform_indices = @transform_0, window_bounds = array<i64: 8, 128>}, {pipeline_mode = #tpu.pipeline_mode<synchronous>, transform_indices = @transform_1, window_bounds = array<i64: 3, 128>}, {transform_indices = @transform_2, window_bounds = array<i64: 8, 128>}]} {
    %c0 = arith.constant 0 : index
    %c0_0 = arith.constant 0 : index
    %0 = vector.load %arg1[%c0, %c0_0] : memref<8x128xf32, #tpu.memory_space<vmem>>, vector<8x128xf32>
    %c0_1 = arith.constant 0 : index
    %c0_2 = arith.constant 0 : index
    %1 = vector.load %arg2[%c0_1, %c0_2] : memref<3x128xf32, #tpu.memory_space<vmem>>, vector<3x128xf32>
    %2 = vector.extract_strided_slice %1 {offsets = [0, 0], sizes = [1, 128], strides = [1, 1]} : vector<3x128xf32> to vector<1x128xf32>
    %3 = vector.extract_strided_slice %1 {offsets = [1, 0], sizes = [1, 128], strides = [1, 1]} : vector<3x128xf32> to vector<1x128xf32>
    %4 = vector.extract_strided_slice %1 {offsets = [2, 0], sizes = [1, 128], strides = [1, 1]} : vector<3x128xf32> to vector<1x128xf32>
    %5 = vector.broadcast %2 : vector<1x128xf32> to vector<8x128xf32>
    %6 = arith.mulf %5, %0 : vector<8x128xf32>
    %7 = math.tanh %6 : vector<8x128xf32>
    %8 = vector.broadcast %3 : vector<1x128xf32> to vector<8x128xf32>
    %9 = arith.mulf %8, %7 : vector<8x128xf32>
    %10 = vector.broadcast %4 : vector<1x128xf32> to vector<8x128xf32>
    %11 = arith.addf %9, %10 : vector<8x128xf32>
    %c0_3 = arith.constant 0 : index
    %c0_4 = arith.constant 0 : index
    %12 = vector.load %arg3[%c0_3, %c0_4] : memref<8x128xf32, #tpu.memory_space<vmem>>, vector<8x128xf32>
    tpu.vector_store %arg3[%c0_3, %c0_4], %11 {strides = array<i32>} : memref<8x128xf32, #tpu.memory_space<vmem>>, vector<8x128xf32>,
    return
  }
  func.func @transform_0(%arg0: i32) -> (i32, i32) {
    %c0_i32 = arith.constant 0 : i32
    %c0_i32_0 = arith.constant 0 : i32
    return %arg0, %c0_i32 : i32, i32
  }
  func.func @transform_1(%arg0: i32) -> (i32, i32) {
    %c0_i32 = arith.constant 0 : i32
    %c0_i32_0 = arith.constant 0 : i32
    %c0_i32_1 = arith.constant 0 : i32
    return %c0_i32, %c0_i32_0 : i32, i32
  }
  func.func @transform_2(%arg0: i32) -> (i32, i32) {
    %c0_i32 = arith.constant 0 : i32
    %c0_i32_0 = arith.constant 0 : i32
    return %arg0, %c0_i32 : i32, i32
  }
}

</mosaic_0001>

<llo_original>
// kernel: tpu_custom_call.1
$region0: #{tpu_custom_call.1}
  #allocation0 [shape = 'u32[]', space=smem, size = 0x4, offset = 0x4, fixed_abs, tag = 'smem constant byte address 0x4 - core index']
  #allocation1 [shape = 'u32[144,128]{1,0:T(1,128)}', space=vmem, size = 0x12000, scoped, tag = 'internal scratch']
  %s0 = inlined_call_operand.hbm [shape: f32[8,128], index: 0, kind: input, shape index: {}]
  %s1 = inlined_call_operand.hbm [shape: f32[3,128], index: 1, kind: input, shape index: {}]
  %s2 = inlined_call_operand.hbm [shape: f32[8,128], index: 2, kind: output, shape index: {}]
  %s3 = sld [smem:[#allocation0]]
  $region26: #{tpu_custom_call.1} parent=0
    _
  %s5 = ssub.s32 1, %s3
  %s6 = scalar_select 0, %s5, %s3
  $region1: #{tpu_custom_call.1} parent=0
    #allocation2 [shape = 'u8[4096]{0}', space=vmem, size = 0x1000, scoped, tag = 'input window, operand 0, single buffered']
    #allocation3 [shape = 's32[1]{0}', space=sflag, size = 0x4, scoped, tag = 'scoped memory for tpu_custom_call.1']
    #allocation4 [shape = 's32[1]{0}', space=sflag, size = 0x4, scoped, tag = 'scoped memory for tpu_custom_call.1']
    #allocation5 [shape = 'u8[2048]{0}', space=vmem, size = 0x800, scoped, tag = 'input window, operand 1, single buffered']
    #allocation6 [shape = 's32[1]{0}', space=sflag, size = 0x4, scoped, tag = 'scoped memory for tpu_custom_call.1']
    #allocation7 [shape = 'u8[4096]{0}', space=vmem, size = 0x1000, scoped, tag = 'output window, operand 0, single buffered']
    %7 = vsyncpa [#allocation3], 0
    %8 = vsyncpa [#allocation6], 0
    %9 = vsyncpa [#allocation4], 0
    // Predicated region
    $region2: #{tpu_custom_call.1} parent=1 // pred_check
      _
    $region3: #{tpu_custom_call.1} parent=1 // pred_check_branch
      %11 = sbr.rel (0) target = $region5
    $region4: #{tpu_custom_call.1} parent=1 // pred_region
      %s13 = ssub.s32 128, 128
      %14 = vsyncadd [#allocation3], %s13
      %s16 = sshll.u32 [#allocation2], 4
      %s17 = int_to_ptr.vmem [resolvable:$true] %s16
      %19 = dma.hbm_to_vmem [thread:$0]  %s0, 128, %s17, [#allocation3]
    $region5: #{tpu_custom_call.1} parent=1 // pred_fallthru
      _
    // Predicated region
    $region6: #{tpu_custom_call.1} parent=1 // pred_check
      _
    $region7: #{tpu_custom_call.1} parent=1 // pred_check_branch
      %21 = sbr.rel (0) target = $region9
    $region8: #{tpu_custom_call.1} parent=1 // pred_region
      %s23 = ssub.s32 64, 64
      %24 = vsyncadd [#allocation6], %s23
      %s26 = sshll.u32 [#allocation5], 4
      %s27 = int_to_ptr.vmem [resolvable:$true] %s26
      %29 = dma.hbm_to_vmem [thread:$0]  %s1, 64, %s27, [#allocation6]
    $region9: #{tpu_custom_call.1} parent=1 // pred_fallthru
      _
    // Predicated region
    $region10: #{tpu_custom_call.1} parent=1 // pred_check
      _
    $region11: #{tpu_custom_call.1} parent=1 // pred_check_branch
      %31 = sbr.rel (0) target = $region13
    $region12: #{tpu_custom_call.1} parent=1 // pred_region
      %32 = dma.done [#allocation3], 128
    $region13: #{tpu_custom_call.1} parent=1 // pred_fallthru
      _
    // Predicated region
    $region14: #{tpu_custom_call.1} parent=1 // pred_check
      _
    $region15: #{tpu_custom_call.1} parent=1 // pred_check_branch
      %34 = sbr.rel (0) target = $region17
    $region16: #{tpu_custom_call.1} parent=1 // pred_region
      %35 = dma.done [#allocation6], 64
    $region17: #{tpu_custom_call.1} parent=1 // pred_fallthru
      _
    %v36 = vld [vmem:[#allocation2] sm:$0xff]
    %v37 = vld [vmem:[#allocation5] sm:$0x7]
    %v38 = vlaneseq
    %v39 = vshrl.u32 %v38, 7
    %v40 = vsub.s32 0, %v39
    %v41 = vrot.slane %v37, %v40
    %v42 = vmul.f32 %v41, %v36
    %v43 = vtanh.pop %v42
    %v44 = vlaneseq
    %v45 = vshrl.u32 %v44, 7
    %v46 = vsub.s32 1, %v45
    %v47 = vrot.slane %v37, %v46
    %v48 = vmul.f32 %v47, %v43
    %v49 = vlaneseq
    %v50 = vshrl.u32 %v49, 7
    %v51 = vsub.s32 2, %v50
    %v52 = vrot.slane %v37, %v51
    %v53 = vadd.f32 %v48, %v52
    %54 = vst [vmem:[#allocation7] sm:$0xff] %v53
    // Predicated region
    $region18: #{tpu_custom_call.1} parent=1 // pred_check
      _
    $region19: #{tpu_custom_call.1} parent=1 // pred_check_branch
      %56 = sbr.rel (0) target = $region21
    $region20: #{tpu_custom_call.1} parent=1 // pred_region
      %s58 = ssub.s32 128, 128
      %59 = vsyncadd [#allocation4], %s58
      %s61 = sshll.u32 [#allocation7], 4
      %s62 = int_to_ptr.vmem [resolvable:$true] %s61
      %64 = dma.vmem_to_hbm [thread:$0]  %s62, 128, %s2, [#allocation4]
    $region21: #{tpu_custom_call.1} parent=1 // pred_fallthru
      _
    // Predicated region
    $region22: #{tpu_custom_call.1} parent=1 // pred_check
      _
    $region23: #{tpu_custom_call.1} parent=1 // pred_check_branch
      %66 = sbr.rel (0) target = $region25
    $region24: #{tpu_custom_call.1} parent=1 // pred_region
      %67 = dma.done [#allocation4], 128
    $region25: #{tpu_custom_call.1} parent=1 // pred_fallthru
      _
    %68 = vsyncpa [#allocation3], 1
    %69 = vsyncpa [#allocation6], 1
    %70 = vsyncpa [#allocation4], 1

</llo_original>
